<compile_context>
chip_gen: v5e
topology: v5e:2x2
jax: 0.10.0
libtpu: 0.0.40
codegen_flags: <defaults>
</compile_context>

<pallas_src>
import functools

import jax
import jax.numpy as jnp
from jax.experimental import pallas as pl
from jax.experimental.pallas import tpu as pltpu

HIDDEN = 256
MODE_REP = {'CoM': 'com_coords', 'BBox': 'bbox_coords'}
IN_FEATS = {'CoM': 2, 'BBox': 4}

TILE_CAP = 2048     # max rows per grid step (blocks stay tiny vs. scoped VMEM)
TILE_FLOOR = 256    # don't split below this (per-step overhead ~0.35 us)


def _round_up(x, m):
    return ((x + m - 1) // m) * m


def _pick_tile(n):
    """Row tile (multiple of 8).

    Small n: a single block (dispatch-overhead regime).  Larger n: an even
    number of steps (>= 2), each <= TILE_CAP rows, so the 'parallel' grid axis
    can shard across both TensorCores on v7x and pipeline over HBM.
    """
    if n <= 2 * TILE_FLOOR:
        return min(TILE_CAP, _round_up(n, 8))
    steps = max(2, 2 * pl.cdiv(n, 2 * TILE_CAP))          # even step count
    return max(TILE_FLOOR, min(TILE_CAP, _round_up(pl.cdiv(n, steps), 8)))


def _mlp_kernel(x_ref, w1_ref, b1_ref, w2_ref, b2_ref, o_ref):
    """out = relu(x @ W1 + b1) @ W2 + b2 for one row tile.

    Layer 1 (K = 2 or 4) runs on the VPU as an unrolled broadcast-FMA with the
    bias folded into the first term; layer 2 is one (tile,256)@(256,slot_dim)
    MXU matmul (N <= 128 costs the same MXU pushes as N = 128).
    """
    x = x_ref[...]                                        # (tile, in_feats)
    h = x[:, 0:1] * w1_ref[0:1, :] + b1_ref[...]          # (tile, 256), bias folded
    for k in range(1, x.shape[1]):                        # static unroll (1 or 3 more)
        h = h + x[:, k:k + 1] * w1_ref[k:k + 1, :]
    h = jnp.maximum(h, 0.0)                               # ReLU
    out = jnp.dot(h, w2_ref[...], preferred_element_type=jnp.float32)
    o_ref[...] = (out + b2_ref[...]).astype(o_ref.dtype)


@functools.partial(jax.jit, static_argnames=("num_slots", "slot_dim"))
def _coord_init_forward(coords, w1, b1, w2, b2, *, num_slots, slot_dim):
    """Fused preprocessing + Pallas MLP encoder. Returns (B, num_slots, slot_dim)."""
    if coords.ndim == 4:
        coords = coords[:, 0]
    coords = coords.astype(jnp.float32)
    B, num_coords, in_feats = coords.shape

    if num_coords < num_slots:
        # TODO(synk): the PyTorch reference concatenates the -1 padding along dim=2
        # (a bug that would break the following Linear); we pad along the slot axis.
        pad = jnp.full((B, num_slots - num_coords, in_feats), -1.0, jnp.float32)
        coords = jnp.concatenate([coords, pad], axis=1)

    n = B * num_slots
    x = coords.reshape(n, in_feats)

    tile = _pick_tile(n)
    grid = (pl.cdiv(n, tile),)      # ragged last block: OOB rows read garbage,
                                    # are computed row-independently, never written.

    cost = pl.CostEstimate(
        flops=2 * n * HIDDEN * (in_feats + slot_dim),
        transcendentals=0,
        bytes_accessed=4 * (n * (in_feats + slot_dim)
                            + in_feats * HIDDEN + HIDDEN
                            + HIDDEN * slot_dim + slot_dim),
    )

    out = pl.pallas_call(
        _mlp_kernel,
        out_shape=jax.ShapeDtypeStruct((n, slot_dim), jnp.float32),
        grid=grid,
        in_specs=[
            pl.BlockSpec((tile, in_feats), lambda i: (i, 0)),     # x : row-tiled
            pl.BlockSpec((in_feats, HIDDEN), lambda i: (0, 0)),   # W1: resident
            pl.BlockSpec((1, HIDDEN), lambda i: (0, 0)),          # b1: resident
            pl.BlockSpec((HIDDEN, slot_dim), lambda i: (0, 0)),   # W2: resident
            pl.BlockSpec((1, slot_dim), lambda i: (0, 0)),        # b2: resident
        ],
        out_specs=pl.BlockSpec((tile, slot_dim), lambda i: (i, 0)),
        compiler_params=pltpu.CompilerParams(
            dimension_semantics=("parallel",)),
        cost_estimate=cost,
    )(x, w1, b1, w2, b2)

    return out.reshape(B, num_slots, slot_dim)


class CoordInitPallas:
    """JAX/Pallas re-implementation of CoordInit's forward pass."""

    def __init__(self, slot_dim, num_slots, mode, key):
        assert mode in MODE_REP, f"Unknown mode = {mode!r}. Use one of {list(MODE_REP)}"
        self.slot_dim = slot_dim
        self.num_slots = num_slots
        self.mode = mode
        self.in_feats = IN_FEATS[mode]

        # torch.nn.Linear-style init: uniform(-1/sqrt(fan_in), 1/sqrt(fan_in)).
        # Weights stored as (in, out) so the hot path is x @ W.
        k1, k2, k3, k4 = jax.random.split(key, 4)
        bound1 = 1.0 / (self.in_feats ** 0.5)
        bound2 = 1.0 / (HIDDEN ** 0.5)
        self.w1 = jax.random.uniform(k1, (self.in_feats, HIDDEN), jnp.float32,
                                     -bound1, bound1)
        self.b1 = jax.random.uniform(k2, (1, HIDDEN), jnp.float32, -bound1, bound1)
        self.w2 = jax.random.uniform(k3, (HIDDEN, slot_dim), jnp.float32,
                                     -bound2, bound2)
        self.b2 = jax.random.uniform(k4, (1, slot_dim), jnp.float32, -bound2, bound2)

    def __call__(self, **kwargs):
        rep_name = MODE_REP[self.mode]
        coords = kwargs.get(rep_name, None)
        if coords is None:
            # TODO(synk): the reference also rejects all-zero coords via coords.sum()==0;
            # that forces a host sync and rejects legitimate zero inputs, so it is dropped.
            raise ValueError(
                f"{self.mode} Initializer requires '{rep_name}' as input...")

        num_coords = coords.shape[1]
        if num_coords > self.num_slots:
            raise ValueError(
                f"There shouldnt be more num_coords = {num_coords!r} than "
                f"self.num_slots = {self.num_slots!r}! ")

        return _coord_init_forward(coords, self.w1, self.b1, self.w2, self.b2,
                                   num_slots=self.num_slots,
                                   slot_dim=self.slot_dim)


def _reference(coords_flat, w1, b1, w2, b2):
    h = jnp.maximum(coords_flat @ w1 + b1, 0.0)
    return h @ w2 + b2


if __name__ == "__main__":
    key = jax.random.PRNGKey(0)
    k_params, k_coords, k_coords2, k_params3, k_coords3 = jax.random.split(key, 5)

    B, num_slots, slot_dim = 2, 8, 32
    mode = "CoM"                      # in_feats = 2  ([y, x] center of mass)
    in_feats = IN_FEATS[mode]

    module = CoordInitPallas(slot_dim=slot_dim, num_slots=num_slots,
                             mode=mode, key=k_params)

    # Case 1: full set of CoM coordinates, shape (B, num_slots, 2).
    com_coords = jax.random.uniform(k_coords, (B, num_slots, in_feats), jnp.float32)
    slots = jax.block_until_ready(module(com_coords=com_coords))

    ref = _reference(com_coords.reshape(-1, in_feats),
                     module.w1, module.b1, module.w2, module.b2
                     ).reshape(B, num_slots, slot_dim)
    assert slots.shape == (B, num_slots, slot_dim)
    assert jnp.allclose(slots, ref, atol=1e-4, rtol=1e-5)

    # Case 2: fewer coords than slots -> -1 padding path.
    num_coords = 6
    com_small = jax.random.uniform(k_coords2, (B, num_coords, in_feats), jnp.float32)
    slots2 = jax.block_until_ready(module(com_coords=com_small))

    padded = jnp.concatenate(
        [com_small, -jnp.ones((B, num_slots - num_coords, in_feats), jnp.float32)],
        axis=1)
    ref2 = _reference(padded.reshape(-1, in_feats),
                      module.w1, module.b1, module.w2, module.b2
                      ).reshape(B, num_slots, slot_dim)
    assert slots2.shape == (B, num_slots, slot_dim)
    assert jnp.allclose(slots2, ref2, atol=1e-4, rtol=1e-5)

    # Case 3: BBox mode (in_feats = 4) with n = 40*13 = 520 rows -> 2-step
    # "parallel" grid with a ragged (partial) last block; verifies the
    # cdiv-grid path on hardware.
    B3, num_slots3 = 40, 13
    module3 = CoordInitPallas(slot_dim=slot_dim, num_slots=num_slots3,
                              mode="BBox", key=k_params3)
    bbox = jax.random.uniform(k_coords3, (B3, num_slots3, IN_FEATS["BBox"]),
                              jnp.float32)
    slots3 = jax.block_until_ready(module3(bbox_coords=bbox))
    ref3 = _reference(bbox.reshape(-1, IN_FEATS["BBox"]),
                      module3.w1, module3.b1, module3.w2, module3.b2
                      ).reshape(B3, num_slots3, slot_dim)
    assert slots3.shape == (B3, num_slots3, slot_dim)
    assert jnp.allclose(slots3, ref3, atol=1e-4, rtol=1e-5)

    print("KERNEL_OK")
</pallas_src>

<mosaic_0001>
module attributes {stable_mosaic.version = 11 : i64} {
  func.func @_mlp_kernel(%arg0: i32, %arg1: memref<16x2xf32, #tpu.memory_space<vmem>>, %arg2: memref<2x256xf32, #tpu.memory_space<vmem>>, %arg3: memref<1x256xf32, #tpu.memory_space<vmem>>, %arg4: memref<256x32xf32, #tpu.memory_space<vmem>>, %arg5: memref<1x32xf32, #tpu.memory_space<vmem>>, %arg6: memref<16x32xf32, #tpu.memory_space<vmem>>) attributes {dimension_semantics = [#tpu.dimension_semantics<parallel>], iteration_bounds = array<i64: 1>, scalar_prefetch = 0 : i64, scratch_operands = 0 : i64, tpu.core_type = #tpu.core_type<tc>, window_params = [{transform_indices = @transform_0, window_bounds = array<i64: 16, 2>}, {pipeline_mode = #tpu.pipeline_mode<synchronous>, transform_indices = @transform_1, window_bounds = array<i64: 2, 256>}, {pipeline_mode = #tpu.pipeline_mode<synchronous>, transform_indices = @transform_2, window_bounds = array<i64: 1, 256>}, {pipeline_mode = #tpu.pipeline_mode<synchronous>, transform_indices = @transform_3, window_bounds = array<i64: 256, 32>}, {pipeline_mode = #tpu.pipeline_mode<synchronous>, transform_indices = @transform_4, window_bounds = array<i64: 1, 32>}, {transform_indices = @transform_5, window_bounds = array<i64: 16, 32>}]} {
    %c0 = arith.constant 0 : index
    %c0_0 = arith.constant 0 : index
    %0 = vector.load %arg1[%c0, %c0_0] : memref<16x2xf32, #tpu.memory_space<vmem>>, vector<16x2xf32>
    %1 = vector.extract_strided_slice %0 {offsets = [0, 0], sizes = [16, 1], strides = [1, 1]} : vector<16x2xf32> to vector<16x1xf32>
    %c0_1 = arith.constant 0 : index
    %c0_2 = arith.constant 0 : index
    %2 = vector.load %arg2[%c0_1, %c0_2] : memref<2x256xf32, #tpu.memory_space<vmem>>, vector<1x256xf32>
    %3 = vector.broadcast %1 : vector<16x1xf32> to vector<16x256xf32>
    %4 = vector.broadcast %2 : vector<1x256xf32> to vector<16x256xf32>
    %5 = arith.mulf %3, %4 : vector<16x256xf32>
    %c0_3 = arith.constant 0 : index
    %c0_4 = arith.constant 0 : index
    %6 = vector.load %arg3[%c0_3, %c0_4] : memref<1x256xf32, #tpu.memory_space<vmem>>, vector<1x256xf32>
    %7 = vector.broadcast %6 : vector<1x256xf32> to vector<16x256xf32>
    %8 = arith.addf %5, %7 : vector<16x256xf32>
    %9 = vector.extract_strided_slice %0 {offsets = [0, 1], sizes = [16, 1], strides = [1, 1]} : vector<16x2xf32> to vector<16x1xf32>
    %c1 = arith.constant 1 : index
    %c0_5 = arith.constant 0 : index
    %10 = vector.load %arg2[%c1, %c0_5] : memref<2x256xf32, #tpu.memory_space<vmem>>, vector<1x256xf32>
    %11 = vector.broadcast %9 : vector<16x1xf32> to vector<16x256xf32>
    %12 = vector.broadcast %10 : vector<1x256xf32> to vector<16x256xf32>
    %13 = arith.mulf %11, %12 : vector<16x256xf32>
    %14 = arith.addf %8, %13 : vector<16x256xf32>
    %cst = arith.constant 0.000000e+00 : f32
    %15 = vector.broadcast %cst : f32 to vector<16x256xf32>
    %16 = arith.maximumf %14, %15 : vector<16x256xf32>
    %c0_6 = arith.constant 0 : index
    %c0_7 = arith.constant 0 : index
    %17 = vector.load %arg4[%c0_6, %c0_7] : memref<256x32xf32, #tpu.memory_space<vmem>>, vector<256x32xf32>
    %cst_8 = arith.constant dense<0.000000e+00> : vector<16x32xf32>
    %18 = tpu.matmul %16, %17, %cst_8 {dimension_numbers = #tpu.dot_dimension_numbers<[1], [0], [0], [1], [0, 0, 1, 1], [], []>} : vector<16x256xf32>, vector<256x32xf32>, vector<16x32xf32> -> vector<16x32xf32>
    %c0_9 = arith.constant 0 : index
    %c0_10 = arith.constant 0 : index
    %19 = vector.load %arg5[%c0_9, %c0_10] : memref<1x32xf32, #tpu.memory_space<vmem>>, vector<1x32xf32>
    %20 = vector.broadcast %19 : vector<1x32xf32> to vector<16x32xf32>
    %21 = arith.addf %18, %20 : vector<16x32xf32>
    %c0_11 = arith.constant 0 : index
    %c0_12 = arith.constant 0 : index
    %22 = vector.load %arg6[%c0_11, %c0_12] : memref<16x32xf32, #tpu.memory_space<vmem>>, vector<16x32xf32>
    tpu.vector_store %arg6[%c0_11, %c0_12], %21 {strides = array<i32>} : memref<16x32xf32, #tpu.memory_space<vmem>>, vector<16x32xf32>,
    return
  }
  func.func @transform_0(%arg0: i32) -> (i32, i32) {
    %c0_i32 = arith.constant 0 : i32
    %c0_i32_0 = arith.constant 0 : i32
    return %arg0, %c0_i32 : i32, i32
  }
  func.func @transform_1(%arg0: i32) -> (i32, i32) {
    %c0_i32 = arith.constant 0 : i32
    %c0_i32_0 = arith.constant 0 : i32
    %c0_i32_1 = arith.constant 0 : i32
    return %c0_i32, %c0_i32_0 : i32, i32
  }
  func.func @transform_2(%arg0: i32) -> (i32, i32) {
    %c0_i32 = arith.constant 0 : i32
    %c0_i32_0 = arith.constant 0 : i32
    %c0_i32_1 = arith.constant 0 : i32
    return %c0_i32, %c0_i32_0 : i32, i32
  }
  func.func @transform_3(%arg0: i32) -> (i32, i32) {
    %c0_i32 = arith.constant 0 : i32
    %c0_i32_0 = arith.constant 0 : i32
    %c0_i32_1 = arith.constant 0 : i32
    return %c0_i32, %c0_i32_0 : i32, i32
  }
  func.func @transform_4(%arg0: i32) -> (i32, i32) {
    %c0_i32 = arith.constant 0 : i32
    %c0_i32_0 = arith.constant 0 : i32
    %c0_i32_1 = arith.constant 0 : i32
    return %c0_i32, %c0_i32_0 : i32, i32
  }
  func.func @transform_5(%arg0: i32) -> (i32, i32) {
    %c0_i32 = arith.constant 0 : i32
    %c0_i32_0 = arith.constant 0 : i32
    return %arg0, %c0_i32 : i32, i32
  }
}

</mosaic_0001>

<llo_original>
// kernel: _coord_init_forward.1
$region0: #{_coord_init_forward.1}
  #allocation0 [shape = 'u32[]', space=smem, size = 0x4, offset = 0x4, fixed_abs, tag = 'smem constant byte address 0x4 - core index']
  #allocation1 [shape = 'u32[72,128]{1,0:T(1,128)}', space=vmem, size = 0x9000, scoped, tag = 'internal scratch']
  %s0 = inlined_call_operand.vmem [shape: f32[16,2], index: 0, kind: input, shape index: {}]
  %s1 = inlined_call_operand.vmem [shape: f32[2,256], index: 1, kind: input, shape index: {}]
  %s2 = inlined_call_operand.vmem [shape: f32[1,256], index: 2, kind: input, shape index: {}]
  %s3 = inlined_call_operand.vmem [shape: f32[256,32], index: 3, kind: input, shape index: {}]
  %s4 = inlined_call_operand.vmem [shape: f32[1,32], index: 4, kind: input, shape index: {}]
  %s5 = inlined_call_operand.hbm [shape: f32[16,32], index: 5, kind: output, shape index: {}]
  %s6 = sld [smem:[#allocation0]]
  $region30: #{_coord_init_forward.1} parent=0
    _
  %s8 = ssub.s32 1, %s6
  %s9 = scalar_select 0, %s8, %s6
  $region1: #{_coord_init_forward.1} parent=0
    #allocation2 [shape = 'u8[8192]{0}', space=vmem, size = 0x2000, scoped, tag = 'output window, operand 0, single buffered']
    #allocation3 [shape = 's32[1]{0}', space=sflag, size = 0x4, scoped, tag = 'scoped memory for _coord_init_forward.1']
    %10 = vsyncpa [#allocation3], 0
    // Predicated region
    $region2: #{_coord_init_forward.1} parent=1 // pred_check
      _
    $region3: #{_coord_init_forward.1} parent=1 // pred_check_branch
      %12 = sbr.rel (0) target = $region5
    $region4: #{_coord_init_forward.1} parent=1 // pred_region
      _
    $region5: #{_coord_init_forward.1} parent=1 // pred_fallthru
      _
    // Predicated region
    $region6: #{_coord_init_forward.1} parent=1 // pred_check
      _
    $region7: #{_coord_init_forward.1} parent=1 // pred_check_branch
      %14 = sbr.rel (0) target = $region9
    $region8: #{_coord_init_forward.1} parent=1 // pred_region
      _
    $region9: #{_coord_init_forward.1} parent=1 // pred_fallthru
      _
    // Predicated region
    $region10: #{_coord_init_forward.1} parent=1 // pred_check
      _
    $region11: #{_coord_init_forward.1} parent=1 // pred_check_branch
      %16 = sbr.rel (0) target = $region13
    $region12: #{_coord_init_forward.1} parent=1 // pred_region
      _
    $region13: #{_coord_init_forward.1} parent=1 // pred_fallthru
      _
    // Predicated region
    $region14: #{_coord_init_forward.1} parent=1 // pred_check
      _
    $region15: #{_coord_init_forward.1} parent=1 // pred_check_branch
      %18 = sbr.rel (0) target = $region17
    $region16: #{_coord_init_forward.1} parent=1 // pred_region
      _
    $region17: #{_coord_init_forward.1} parent=1 // pred_fallthru
      _
    // Predicated region
    $region18: #{_coord_init_forward.1} parent=1 // pred_check
      _
    $region19: #{_coord_init_forward.1} parent=1 // pred_check_branch
      %20 = sbr.rel (0) target = $region21
    $region20: #{_coord_init_forward.1} parent=1 // pred_region
      _
    $region21: #{_coord_init_forward.1} parent=1 // pred_fallthru
      _
    %v21 = vld [vmem:[%s0] sm:$0xff]
    %v22 = vld [vmem:[%s0 + $0x8] sm:$0xff]
    %v23 = vld [vmem:[%s1] ss:$2 sm:$0x3]
    %25 = vset.pattern.permute.xlu0 0
    %26 = vperm.xlu0 %25, %v21
    %v27 = vpop.permute.xlu0 %26
    %30 = vset.pattern.permute.xlu0 0
    %31 = vperm.xlu0 %30, %v22
    %v32 = vpop.permute.xlu0 %31
    %v35 = vperm.slane %v23, 0
    %v36 = vperm.slane %v23, 1
    %v39 = vmul.f32 %v27, %v35
    %v40 = vmul.f32 %v27, %v36
    %v41 = vmul.f32 %v32, %v35
    %v42 = vmul.f32 %v32, %v36
    %v43 = vld [vmem:[%s2] sm:$0x3]
    %v45 = vperm.slane %v43, 0
    %v46 = vperm.slane %v43, 1
    %v49 = vadd.f32 %v39, %v45
    %v50 = vadd.f32 %v40, %v46
    %v51 = vadd.f32 %v41, %v45
    %v52 = vadd.f32 %v42, %v46
    %s53 = scalar_lea.vmem %s1, 1
    %v54 = vld [vmem:[%s53] ss:$2 sm:$0x3]
    %55 = vset.pattern.permute.xlu0 1
    %56 = vperm.xlu0 %55, %v21
    %v57 = vpop.permute.xlu0 %56
    %59 = vset.pattern.permute.xlu0 1
    %60 = vperm.xlu0 %59, %v22
    %v61 = vpop.permute.xlu0 %60
    %v64 = vperm.slane %v54, 0
    %v65 = vperm.slane %v54, 1
    %v68 = vmul.f32 %v57, %v64
    %v69 = vmul.f32 %v57, %v65
    %v70 = vmul.f32 %v61, %v64
    %v71 = vmul.f32 %v61, %v65
    %v72 = vadd.f32 %v49, %v68
    %v73 = vadd.f32 %v50, %v69
    %v74 = vadd.f32 %v51, %v70
    %v75 = vadd.f32 %v52, %v71
    %v76 = vmax.f32 %v72, 0.0
    %v77 = vmax.f32 %v73, 0.0
    %v78 = vmax.f32 %v74, 0.0
    %v79 = vmax.f32 %v75, 0.0
    %v80 = vld [vmem:[%s3] sm:$0xff]
    %v81 = vld [vmem:[%s3 + $0x8] sm:$0xff]
    %v82 = vld [vmem:[%s3 + $0x10] sm:$0xff]
    %v83 = vld [vmem:[%s3 + $0x18] sm:$0xff]
    %v84 = vld [vmem:[%s3 + $0x20] sm:$0xff]
    %v85 = vld [vmem:[%s3 + $0x28] sm:$0xff]
    %v86 = vld [vmem:[%s3 + $0x30] sm:$0xff]
    %v87 = vld [vmem:[%s3 + $0x38] sm:$0xff]
    %v88 = vld [vmem:[%s3 + $0x40] sm:$0xff]
    %v89 = vld [vmem:[%s3 + $0x48] sm:$0xff]
    %v90 = vld [vmem:[%s3 + $0x50] sm:$0xff]
    %v91 = vld [vmem:[%s3 + $0x58] sm:$0xff]
    %v92 = vld [vmem:[%s3 + $0x60] sm:$0xff]
    %v93 = vld [vmem:[%s3 + $0x68] sm:$0xff]
    %v94 = vld [vmem:[%s3 + $0x70] sm:$0xff]
    %v95 = vld [vmem:[%s3 + $0x78] sm:$0xff]
    %v96 = vld [vmem:[%s3 + $0x80] sm:$0xff]
    %v97 = vld [vmem:[%s3 + $0x88] sm:$0xff]
    %v98 = vld [vmem:[%s3 + $0x90] sm:$0xff]
    %v99 = vld [vmem:[%s3 + $0x98] sm:$0xff]
    %v100 = vld [vmem:[%s3 + $0xa0] sm:$0xff]
    %v101 = vld [vmem:[%s3 + $0xa8] sm:$0xff]
    %v102 = vld [vmem:[%s3 + $0xb0] sm:$0xff]
    %v103 = vld [vmem:[%s3 + $0xb8] sm:$0xff]
    %v104 = vld [vmem:[%s3 + $0xc0] sm:$0xff]
    %v105 = vld [vmem:[%s3 + $0xc8] sm:$0xff]
    %v106 = vld [vmem:[%s3 + $0xd0] sm:$0xff]
    %v107 = vld [vmem:[%s3 + $0xd8] sm:$0xff]
    %v108 = vld [vmem:[%s3 + $0xe0] sm:$0xff]
    %v109 = vld [vmem:[%s3 + $0xe8] sm:$0xff]
    %v110 = vld [vmem:[%s3 + $0xf0] sm:$0xff]
    %v111 = vld [vmem:[%s3 + $0xf8] sm:$0xff]
    %v112 = vld [vmem:[%s4] sm:$0x1]
    %v114 = vperm.slane %v112, 0
    %116 = vmatpush.msra.mxu0 %v95
    %117 = vmatpush.msra.mxu0 %v94
    %118 = vmatpush.msra.mxu0 %v93
    %119 = vmatpush.msra.mxu0 %v92
    %120 = vmatpush.msra.mxu0 %v91
    %121 = vmatpush.msra.mxu0 %v90
    %122 = vmatpush.msra.mxu0 %v89
    %123 = vmatpush.msra.mxu0 %v88
    %124 = vmatpush.msra.mxu0 %v87
    %125 = vmatpush.msra.mxu0 %v86
    %126 = vmatpush.msra.mxu0 %v85
    %127 = vmatpush.msra.mxu0 %v84
    %128 = vmatpush.msra.mxu0 %v83
    %129 = vmatpush.msra.mxu0 %v82
    %130 = vmatpush.msra.mxu0 %v81
    %131 = vmatpush.msra.mxu0 %v80
    %132 = vmatmul.f32.gmra.mxu0 %v76
    %v133 = vpop.f32.mrf.mxu0
    %v134 = vadd.f32 %v114, %v133
    %135 = vmatmul.f32.gmra.mxu0 %v78
    %v136 = vpop.f32.mrf.mxu0
    %v137 = vadd.f32 %v114, %v136
    %138 = vdwg.mxu0
    %139 = vmatpush.msra.mxu0 %v111
    %140 = vmatpush.msra.mxu0 %v110
    %141 = vmatpush.msra.mxu0 %v109
    %142 = vmatpush.msra.mxu0 %v108
    %143 = vmatpush.msra.mxu0 %v107
    %144 = vmatpush.msra.mxu0 %v106
    %145 = vmatpush.msra.mxu0 %v105
    %146 = vmatpush.msra.mxu0 %v104
    %147 = vmatpush.msra.mxu0 %v103
    %148 = vmatpush.msra.mxu0 %v102
    %149 = vmatpush.msra.mxu0 %v101
    %150 = vmatpush.msra.mxu0 %v100
    %151 = vmatpush.msra.mxu0 %v99
    %152 = vmatpush.msra.mxu0 %v98
    %153 = vmatpush.msra.mxu0 %v97
    %154 = vmatpush.msra.mxu0 %v96
    %155 = vmatmul.f32.gmra.mxu0 %v77
    %v156 = vpop.f32.mrf.mxu0
    %v157 = vadd.f32 %v134, %v156
    %158 = vmatmul.f32.gmra.mxu0 %v79
    %v159 = vpop.f32.mrf.mxu0
    %v160 = vadd.f32 %v137, %v159
    %161 = vdwg.mxu0
    %vm162 = vcmask 261120
    %163 = vst.msk [vmem:[#allocation2] sm:$0xff] %vm162, %v157
    %164 = vst.msk [vmem:[#allocation2 + $0x8] sm:$0xff] %vm162, %v160
    // Predicated region
    $region22: #{_coord_init_forward.1} parent=1 // pred_check
      _
    $region23: #{_coord_init_forward.1} parent=1 // pred_check_branch
      %166 = sbr.rel (0) target = $region25
    $region24: #{_coord_init_forward.1} parent=1 // pred_region
      %168 = vsyncadd [#allocation3], 0
      %s169 = sshll.u32 [#allocation2], 4
      %s170 = int_to_ptr.vmem [resolvable:$true] %s169
      %s171 = sshll.u32 %s5, 4
      %s172 = int_to_ptr.hbm [resolvable:$true] %s171
      %177 = dma.vmem_to_hbm [thread:$0]  %s170, 256, %s172, [#allocation3], 128, 128, 8
    $region25: #{_coord_init_forward.1} parent=1 // pred_fallthru
      _
    // Predicated region
    $region26: #{_coord_init_forward.1} parent=1 // pred_check
      _
    $region27: #{_coord_init_forward.1} parent=1 // pred_check_branch
      %179 = sbr.rel (0) target = $region29
    $region28: #{_coord_init_forward.1} parent=1 // pred_region
      %181 = dma.done [#allocation3], 256
    $region29: #{_coord_init_forward.1} parent=1 // pred_fallthru
      _
    %182 = vsyncpa [#allocation3], 1

</llo_original>
